<compile_context>
chip_gen: v5e
topology: v5e:2x2
jax: 0.10.0
libtpu: 0.0.40
codegen_flags: <defaults>
</compile_context>

<pallas_src>
import jax
import jax.numpy as jnp
from jax.experimental import pallas as pl
from jax.experimental.pallas import tpu as pltpu


def _round_up(x, m):
    return (x + m - 1) // m * m


def _hier_kernel(x_ref, idx_ref, w_ref, out_ref):
    """One grid step: out^T tile = [beta | u]^T @ [X^T ; onehot^T] (single MXU call)."""
    nfp, tm = x_ref.shape                 # X^T tile: (n_fixed padded to 8, tm)
    cp = w_ref.shape[1]                   # fused contraction depth (mult. of 128)

    # One-hot gather matrix built directly in transposed form:
    # row j of the onehot block selects u_flat row j for every output column.
    row = jax.lax.broadcasted_iota(jnp.int32, (cp - nfp, tm), 0)
    onehot_t = (row == idx_ref[...]).astype(jnp.float32)       # (cp - nfp, tm)

    # Fused RHS operand [X^T ; onehot^T]; concat boundary is 8-sublane aligned.
    a_t = jnp.concatenate([x_ref[...], onehot_t], axis=0)      # (cp, tm)

    # Single fused MXU call: fixed effects + gathered random effects.
    out_ref[...] = jnp.dot(w_ref[...], a_t,
                           preferred_element_type=jnp.float32)  # (Kp, tm)


def hier_forward_pallas(X, beta, raw_rho, Sigma, eps,
                        batter_ids, league_ids, season_ids, *,
                        block_rows=512):
    n, n_fixed = X.shape
    B, L, T, K = eps.shape
    TBL = B * L * T
    f32 = jnp.float32

    # ---------- glue: hoisted AR(1) random-effects table (tiny) ------------
    sigma_half = jnp.linalg.cholesky(Sigma.astype(f32))         # (K, L, L)
    diag = jnp.diagonal(sigma_half, axis1=1, axis2=2)           # (K, L)
    scale = diag.T                                              # (L, K) = SigmaHalf[k,l,l]
    rho = jnp.tanh(raw_rho.astype(f32))                         # (L, K)
    eps_f = eps.astype(f32)
    us = [eps_f[:, :, 0, :]]
    for t in range(1, T):                                       # T small & static
        us.append(rho[None] * us[-1] + scale[None] * eps_f[:, :, t, :])
    u = jnp.stack(us, axis=2)                                   # (B, L, T, K)
    u_flat = u.reshape(TBL, K)                                  # row = (b*L + l)*T + t

    # ---------- K-major fused weight table: [beta^T | u_flat^T] ------------
    nfp = _round_up(n_fixed, 8)                 # 8-sublane aligned X^T rows
    Kp = _round_up(K, 8)                        # outcome axis in sublanes
    Cp = _round_up(nfp + TBL, 128)              # lane-dense fused contraction
    W_T = jnp.zeros((Kp, Cp), f32)
    W_T = W_T.at[:K, :n_fixed].set(beta.astype(f32).T)
    W_T = W_T.at[:K, nfp:nfp + TBL].set(u_flat.T)

    # ---------- streamed inputs, transposed so n is the 128-lane axis ------
    tm = _round_up(min(block_rows, n), 128)
    if _round_up(n, tm) // tm < 2 and n > 128:
        # v7x has 2 TensorCores: give the "parallel" grid at least 2 steps.
        tm = _round_up(-(-n // 2), 128)
    n_pad = _round_up(n, tm)

    X_T = jnp.zeros((nfp, n_pad), f32).at[:n_fixed, :n].set(X.astype(f32).T)
    flat_idx = ((batter_ids.astype(jnp.int32) * L + league_ids.astype(jnp.int32)) * T
                + season_ids.astype(jnp.int32))                 # in [0, TBL)
    idx_p = jnp.full((1, n_pad), -1, jnp.int32).at[0, :n].set(flat_idx)

    out_t = pl.pallas_call(
        _hier_kernel,
        out_shape=jax.ShapeDtypeStruct((Kp, n_pad), f32),
        grid=(n_pad // tm,),
        in_specs=[
            pl.BlockSpec((nfp, tm), lambda i: (0, i)),   # X^T       streamed
            pl.BlockSpec((1, tm), lambda i: (0, i)),     # flat idx  streamed
            pl.BlockSpec((Kp, Cp), lambda i: (0, 0)),    # [beta|u]^T resident (~4 KiB)
        ],
        out_specs=pl.BlockSpec((Kp, tm), lambda i: (0, i)),
        compiler_params=pltpu.CompilerParams(
            dimension_semantics=("parallel",)),
    )(X_T, idx_p, W_T)

    # lane-dense transposed output -> (n, K) logits
    return out_t[:K, :n].T


def hier_forward_ref(X, beta, raw_rho, Sigma, eps,
                     batter_ids, league_ids, season_ids):
    """Pure-JAX reference reproducing the PyTorch module semantics
    (torch.einsum('KLL,BLK->BLK', ...) consumes only the factor's diagonal)."""
    B, L, T, K = eps.shape
    fixed = X @ beta
    sigma_half = jnp.linalg.cholesky(Sigma)
    diag = jnp.diagonal(sigma_half, axis1=1, axis2=2)   # (K, L)
    rho = jnp.tanh(raw_rho)                             # (L, K)
    u_t = [eps[:, :, 0, :]]
    for t in range(1, T):
        u_t.append(rho * u_t[-1] + diag.T[None, :, :] * eps[:, :, t, :])
    u = jnp.stack(u_t, axis=2)                          # (B, L, T, K)
    rand = u[batter_ids, league_ids, season_ids, :]
    return fixed + rand


if __name__ == "__main__":
    # small, deterministic problem; n chosen so the parallel grid has 2 tiles
    n, n_fixed = 512, 8
    B, L, T, K = 4, 3, 5, 8

    key = jax.random.PRNGKey(0)
    k_x, k_beta, k_rho, k_eps, k_b, k_l, k_s = jax.random.split(key, 7)

    X = jax.random.normal(k_x, (n, n_fixed), dtype=jnp.float32)
    beta = jax.random.normal(k_beta, (n_fixed, K), dtype=jnp.float32) * 0.1
    raw_rho = jax.random.normal(k_rho, (L, K), dtype=jnp.float32) * 0.5
    # Sigma: K stacked PD matrices (scaled identities, as in the module init)
    Sigma = jnp.stack([jnp.eye(L, dtype=jnp.float32) * (1.0 + 0.1 * k)
                       for k in range(K)], axis=0)
    eps = jax.random.normal(k_eps, (B, L, T, K), dtype=jnp.float32)

    batter_ids = jax.random.randint(k_b, (n,), 0, B, dtype=jnp.int32)
    league_ids = jax.random.randint(k_l, (n,), 0, L, dtype=jnp.int32)
    season_ids = jax.random.randint(k_s, (n,), 0, T, dtype=jnp.int32)

    out = hier_forward_pallas(X, beta, raw_rho, Sigma, eps,
                              batter_ids, league_ids, season_ids,
                              block_rows=512)
    out = jax.block_until_ready(out)

    ref = hier_forward_ref(X, beta, raw_rho, Sigma, eps,
                           batter_ids, league_ids, season_ids)

    assert out.shape == (n, K)
    assert jnp.allclose(out, ref, atol=1e-4, rtol=1e-4), (
        "max abs err = %g" % float(jnp.max(jnp.abs(out - ref))))
    print("KERNEL_OK")
</pallas_src>

<mosaic_0001>
module attributes {stable_mosaic.version = 11 : i64} {
  func.func @_hier_kernel(%arg0: i32, %arg1: memref<8x256xf32, #tpu.memory_space<vmem>>, %arg2: memref<1x256xi32, #tpu.memory_space<vmem>>, %arg3: memref<8x128xf32, #tpu.memory_space<vmem>>, %arg4: memref<8x256xf32, #tpu.memory_space<vmem>>) attributes {dimension_semantics = [#tpu.dimension_semantics<parallel>], iteration_bounds = array<i64: 2>, scalar_prefetch = 0 : i64, scratch_operands = 0 : i64, tpu.core_type = #tpu.core_type<tc>, window_params = [{transform_indices = @transform_0, window_bounds = array<i64: 8, 256>}, {transform_indices = @transform_1, window_bounds = array<i64: 1, 256>}, {pipeline_mode = #tpu.pipeline_mode<synchronous>, transform_indices = @transform_2, window_bounds = array<i64: 8, 128>}, {transform_indices = @transform_3, window_bounds = array<i64: 8, 256>}]} {
    %0 = tpu.iota {dimensions = array<i32: 0>} : vector<120x256xi32>
    %c0 = arith.constant 0 : index
    %c0_0 = arith.constant 0 : index
    %1 = vector.load %arg2[%c0, %c0_0] : memref<1x256xi32, #tpu.memory_space<vmem>>, vector<1x256xi32>
    %2 = vector.broadcast %1 : vector<1x256xi32> to vector<120x256xi32>
    %3 = arith.cmpi eq, %0, %2 : vector<120x256xi32>
    %4 = arith.extui %3 : vector<120x256xi1> to vector<120x256xi32>
    %5 = arith.sitofp %4 : vector<120x256xi32> to vector<120x256xf32>
    %c0_1 = arith.constant 0 : index
    %c0_2 = arith.constant 0 : index
    %6 = vector.load %arg1[%c0_1, %c0_2] : memref<8x256xf32, #tpu.memory_space<vmem>>, vector<8x256xf32>
    %7 = tpu.concatenate %6, %5 in 0 : vector<8x256xf32>, vector<120x256xf32> -> vector<128x256xf32>
    %c0_3 = arith.constant 0 : index
    %c0_4 = arith.constant 0 : index
    %8 = vector.load %arg3[%c0_3, %c0_4] : memref<8x128xf32, #tpu.memory_space<vmem>>, vector<8x128xf32>
    %cst = arith.constant dense<0.000000e+00> : vector<8x256xf32>
    %9 = tpu.matmul %8, %7, %cst {dimension_numbers = #tpu.dot_dimension_numbers<[1], [0], [0], [1], [0, 0, 1, 1], [], []>} : vector<8x128xf32>, vector<128x256xf32>, vector<8x256xf32> -> vector<8x256xf32>
    %c0_5 = arith.constant 0 : index
    %c0_6 = arith.constant 0 : index
    %10 = vector.load %arg4[%c0_5, %c0_6] : memref<8x256xf32, #tpu.memory_space<vmem>>, vector<8x256xf32>
    tpu.vector_store %arg4[%c0_5, %c0_6], %9 {strides = array<i32>} : memref<8x256xf32, #tpu.memory_space<vmem>>, vector<8x256xf32>,
    return
  }
  func.func @transform_0(%arg0: i32) -> (i32, i32) {
    %c0_i32 = arith.constant 0 : i32
    %c0_i32_0 = arith.constant 0 : i32
    return %c0_i32, %arg0 : i32, i32
  }
  func.func @transform_1(%arg0: i32) -> (i32, i32) {
    %c0_i32 = arith.constant 0 : i32
    %c0_i32_0 = arith.constant 0 : i32
    return %c0_i32, %arg0 : i32, i32
  }
  func.func @transform_2(%arg0: i32) -> (i32, i32) {
    %c0_i32 = arith.constant 0 : i32
    %c0_i32_0 = arith.constant 0 : i32
    %c0_i32_1 = arith.constant 0 : i32
    return %c0_i32, %c0_i32_0 : i32, i32
  }
  func.func @transform_3(%arg0: i32) -> (i32, i32) {
    %c0_i32 = arith.constant 0 : i32
    %c0_i32_0 = arith.constant 0 : i32
    return %c0_i32, %arg0 : i32, i32
  }
}

</mosaic_0001>

<llo_original>
// kernel: tpu_custom_call.1
$region0: #{tpu_custom_call.1}
  #allocation0 [shape = 'u32[]', space=smem, size = 0x4, offset = 0x4, fixed_abs, tag = 'smem constant byte address 0x4 - core index']
  #allocation1 [shape = 'u32[72,128]{1,0:T(1,128)}', space=vmem, size = 0x9000, scoped, tag = 'internal scratch']
  %s0 = inlined_call_operand.hbm [shape: f32[8,512], index: 0, kind: input, shape index: {}]
  %s1 = inlined_call_operand.hbm [shape: s32[1,512], index: 1, kind: input, shape index: {}]
  %s2 = inlined_call_operand.hbm [shape: f32[8,128], index: 2, kind: input, shape index: {}]
  %s3 = inlined_call_operand.hbm [shape: f32[8,512], index: 3, kind: output, shape index: {}]
  %s4 = sld [smem:[#allocation0]]
  $region57: #{tpu_custom_call.1} parent=0
    _
  %s6 = ssub.s32 1, %s4
  %s7 = scalar_select 0, %s6, %s4
  $region1: #{tpu_custom_call.1} parent=0
    #allocation2 [shape = 'u8[16384]{0}', space=vmem, size = 0x4000, scoped, tag = 'input window, operand 0']
    #allocation3 [shape = 's32[2]{0}', space=sflag, size = 0x8, scoped, tag = 'scoped memory for tpu_custom_call.1']
    #allocation4 [shape = 's32[2]{0}', space=sflag, size = 0x8, scoped, tag = 'scoped memory for tpu_custom_call.1']
    #allocation5 [shape = 'u8[2048]{0}', space=vmem, size = 0x800, scoped, tag = 'input window, operand 1']
    #allocation6 [shape = 's32[2]{0}', space=sflag, size = 0x8, scoped, tag = 'scoped memory for tpu_custom_call.1']
    #allocation7 [shape = 'u8[4096]{0}', space=vmem, size = 0x1000, scoped, tag = 'input window, operand 2, single buffered']
    #allocation8 [shape = 'u8[16384]{0}', space=vmem, size = 0x4000, scoped, tag = 'output window, operand 0']
    %8 = vsyncpa [#allocation3], 0
    %s9 = scalar_lea.sflag [#allocation3], 1
    %10 = vsyncpa %s9, 0
    %11 = vsyncpa [#allocation6], 0
    %s12 = scalar_lea.sflag [#allocation6], 1
    %13 = vsyncpa %s12, 0
    %14 = vsyncpa [#allocation4], 0
    %s15 = scalar_lea.sflag [#allocation4], 1
    %16 = vsyncpa %s15, 0
    loop: start=0, step=1, limit=4
    $region2: #{tpu_custom_call.1} parent=1 // loop_pre_header
      _
    $region3: #{tpu_custom_call.1} parent=1 // loop_header
      %s18 = sphi 0, %s22
      %p19 = scmp.ge.s32.totalorder %s18, 4
      %s28 = sphi 0, %s30
      %s31 = sphi 0, %s28
      %s32 = sphi 0, %s31
      %s48 = sphi 0, %s32
      %s54 = sphi 0, %s56
      %s57 = sphi 0, %s54
      %s58 = sphi 0, %s57
      %s74 = sphi 0, %s58
      %s78 = sphi 0, %s78
      %s80 = sphi 0, %s78
      %s81 = sphi 0, %s80
      %s95 = sphi 0, %s81
      %s101 = sphi 0, %s103
      %s104 = sphi 0, %s101
      %s105 = sphi 0, %s104
      %s121 = sphi 0, %s105
    $region4: #{tpu_custom_call.1} parent=1 // loop_header_branch
      %21 = sbr.rel (%p19) target = $region8
    $region5: #{tpu_custom_call.1} parent=1 // loop_body
      %s23 = ssub.s32 %s18, 1
      %s24 = ssub.s32 %s18, 2
      %s25 = sadd.s32 %s18, 1
      %s26 = ssub.s32 %s18, %s25
      %p27 = scmp.eq.s32.totalorder %s26, 0
      %s29 = sadd.s32 %s28, 1
      %s30 = scalar_select %p27, %s28, %s29
      %p33 = pneg %p27
      %p34 = scmp.eq.s32.totalorder %s18, 1
      %p35 = por %p33, %p34
      %p36 = scmp.ne.s32.totalorder %s28, %s31
      %p37 = scmp.eq.s32.totalorder %s18, 0
      %p38 = por %p36, %p37
      %p39 = scmp.ne.s32.totalorder %s28, %s31
      %p40 = scmp.eq.s32.totalorder %s23, 1
      %p41 = por %p39, %p40
      %p42 = scmp.ne.s32.totalorder %s31, %s32
      %p43 = scmp.eq.s32.totalorder %s23, 0
      %p44 = por %p42, %p43
      %p45 = scmp.ne.s32.totalorder %s31, %s32
      %p46 = scmp.eq.s32.totalorder %s24, 1
      %p47 = por %p45, %p46
      %p49 = scmp.ne.s32.totalorder %s32, %s48
      %p50 = scmp.eq.s32.totalorder %s24, 0
      %p51 = por %p49, %p50
      %s52 = ssub.s32 %s18, %s25
      %p53 = scmp.eq.s32.totalorder %s52, 0
      %s55 = sadd.s32 %s54, 1
      %s56 = scalar_select %p53, %s54, %s55
      %p59 = pneg %p53
      %p60 = scmp.eq.s32.totalorder %s18, 1
      %p61 = por %p59, %p60
      %p62 = scmp.ne.s32.totalorder %s54, %s57
      %p63 = scmp.eq.s32.totalorder %s18, 0
      %p64 = por %p62, %p63
      %p65 = scmp.ne.s32.totalorder %s54, %s57
      %p66 = scmp.eq.s32.totalorder %s23, 1
      %p67 = por %p65, %p66
      %p68 = scmp.ne.s32.totalorder %s57, %s58
      %p69 = scmp.eq.s32.totalorder %s23, 0
      %p70 = por %p68, %p69
      %p71 = scmp.ne.s32.totalorder %s57, %s58
      %p72 = scmp.eq.s32.totalorder %s24, 1
      %p73 = por %p71, %p72
      %p75 = scmp.ne.s32.totalorder %s58, %s74
      %p76 = scmp.eq.s32.totalorder %s24, 0
      %p77 = por %p75, %p76
      %s79 = sadd.s32 %s78, 1
      %p82 = scmp.eq.s32.totalorder %s18, 1
      %p83 = scmp.ne.s32.totalorder %s78, %s80
      %p84 = scmp.eq.s32.totalorder %s18, 0
      %p85 = por %p83, %p84
      %p86 = scmp.ne.s32.totalorder %s78, %s80
      %p87 = scmp.eq.s32.totalorder %s23, 1
      %p88 = por %p86, %p87
      %p89 = scmp.ne.s32.totalorder %s80, %s81
      %p90 = scmp.eq.s32.totalorder %s23, 0
      %p91 = por %p89, %p90
      %p92 = scmp.ne.s32.totalorder %s80, %s81
      %p93 = scmp.eq.s32.totalorder %s24, 1
      %p94 = por %p92, %p93
      %p96 = scmp.ne.s32.totalorder %s81, %s95
      %p97 = scmp.eq.s32.totalorder %s24, 0
      %p98 = por %p96, %p97
      %s99 = ssub.s32 %s18, %s25
      %p100 = scmp.eq.s32.totalorder %s99, 0
      %s102 = sadd.s32 %s101, 1
      %s103 = scalar_select %p100, %s101, %s102
      %p106 = pneg %p100
      %p107 = scmp.eq.s32.totalorder %s18, 1
      %p108 = por %p106, %p107
      %p109 = scmp.ne.s32.totalorder %s101, %s104
      %p110 = scmp.eq.s32.totalorder %s18, 0
      %p111 = por %p109, %p110
      %p112 = scmp.ne.s32.totalorder %s101, %s104
      %p113 = scmp.eq.s32.totalorder %s23, 1
      %p114 = por %p112, %p113
      %p115 = scmp.ne.s32.totalorder %s104, %s105
      %p116 = scmp.eq.s32.totalorder %s23, 0
      %p117 = por %p115, %p116
      %p118 = scmp.ne.s32.totalorder %s104, %s105
      %p119 = scmp.eq.s32.totalorder %s24, 1
      %p120 = por %p118, %p119
      %p122 = scmp.ne.s32.totalorder %s105, %s121
      %p123 = scmp.eq.s32.totalorder %s24, 0
      %p124 = por %p122, %p123
      %p125 = scmp.le.s32.totalorder 1, %s18
      %p126 = scmp.lt.s32.totalorder %s18, 3
      %p127 = pnand %p125, %p126
      %p128 = pneg %p127
      // Predicated region
      $region9: #{tpu_custom_call.1} parent=5 // pred_check
        _
      $region10: #{tpu_custom_call.1} parent=5 // pred_check_branch
        %130 = sbr.rel (%p127) target = $region12
      $region11: #{tpu_custom_call.1} parent=5 // pred_region
        %s131 = ssub.s32 %s18, 1
        // Predicated region
        $region13: #{tpu_custom_call.1} parent=11 // pred_check
          %p132 = pneg %p91
        $region14: #{tpu_custom_call.1} parent=11 // pred_check_branch
          %134 = sbr.rel (%p132) target = $region16
        $region15: #{tpu_custom_call.1} parent=11 // pred_region
          %136 = vsyncadd [#allocation6], 0
          %s138 = sshll.u32 %s2, 4
          %s139 = int_to_ptr.hbm [resolvable:$true] %s138
          %s140 = sshll.u32 [#allocation7], 4
          %s141 = int_to_ptr.vmem [resolvable:$true] %s140
          %143 = dma.hbm_to_vmem [thread:$0]  %s139, 128, %s141, [#allocation6]
        $region16: #{tpu_custom_call.1} parent=11 // pred_fallthru
          _
      $region12: #{tpu_custom_call.1} parent=5 // pred_fallthru
        _
      %p144 = scmp.lt.s32.totalorder %s18, 2
      // Predicated region
      $region17: #{tpu_custom_call.1} parent=5 // pred_check
        %p145 = pneg %p144
      $region18: #{tpu_custom_call.1} parent=5 // pred_check_branch
        %147 = sbr.rel (%p145) target = $region20
      $region19: #{tpu_custom_call.1} parent=5 // pred_region
        // Predicated region
        $region21: #{tpu_custom_call.1} parent=19 // pred_check
          %p148 = pneg %p38
        $region22: #{tpu_custom_call.1} parent=19 // pred_check_branch
          %150 = sbr.rel (%p148) target = $region24
        $region23: #{tpu_custom_call.1} parent=19 // pred_region
          %s151 = sand.u32 %s28, 1
          %s152 = scalar_lea.sflag [#allocation3], %s151
          %s153 = sand.u32 %s28, 1
          %s154 = smul.addr %s153, 16
          %s155 = scalar_lea.vmem [#allocation2], %s154
          %s156 = smul.u32 2, %s18
          %158 = vsyncadd %s152, 0
          %s159 = smul.addr %s156, 8
          %s160 = scalar_lea.hbm %s0, %s159
          %s162 = sshll.u32 %s160, 4
          %s163 = int_to_ptr.hbm [resolvable:$true] %s162
          %s164 = sshll.u32 %s155, 4
          %s165 = int_to_ptr.vmem [resolvable:$true] %s164
          %167 = dma.hbm_to_vmem [thread:$0]  %s163, 256, %s165, %s152
        $region24: #{tpu_custom_call.1} parent=19 // pred_fallthru
          _
        // Predicated region
        $region25: #{tpu_custom_call.1} parent=19 // pred_check
          %p168 = pneg %p64
        $region26: #{tpu_custom_call.1} parent=19 // pred_check_branch
          %170 = sbr.rel (%p168) target = $region28
        $region27: #{tpu_custom_call.1} parent=19 // pred_region
          %s171 = sand.u32 %s18, 1
          %s172 = scalar_lea.sflag [#allocation6], %s171
          %s173 = sand.u32 %s54, 1
          %s174 = smul.addr %s173, 2
          %s175 = scalar_lea.vmem [#allocation5], %s174
          %s176 = smul.u32 2, %s18
          %178 = vsyncadd %s172, 0
          %s179 = scalar_lea.hbm %s1, %s176
          %s181 = sshll.u32 %s179, 4
          %s182 = int_to_ptr.hbm [resolvable:$true] %s181
          %s183 = sshll.u32 %s175, 4
          %s184 = int_to_ptr.vmem [resolvable:$true] %s183
          %186 = dma.hbm_to_vmem [thread:$0]  %s182, 32, %s184, %s172
        $region28: #{tpu_custom_call.1} parent=19 // pred_fallthru
          _
      $region20: #{tpu_custom_call.1} parent=5 // pred_fallthru
        _
      %p187 = scmp.le.s32.totalorder 1, %s18
      %p188 = scmp.lt.s32.totalorder %s18, 3
      %p189 = pnand %p187, %p188
      %p190 = pneg %p189
      // Predicated region
      $region29: #{tpu_custom_call.1} parent=5 // pred_check
        _
      $region30: #{tpu_custom_call.1} parent=5 // pred_check_branch
        %192 = sbr.rel (%p189) target = $region32
      $region31: #{tpu_custom_call.1} parent=5 // pred_region
        %s193 = ssub.s32 %s18, 1
        %s194 = sand.u32 %s31, 1
        %s195 = scalar_lea.sflag [#allocation3], %s194
        %s196 = sand.u32 %s31, 1
        %s197 = smul.addr %s196, 16
        %s198 = scalar_lea.vmem [#allocation2], %s197
        // Predicated region
        $region33: #{tpu_custom_call.1} parent=31 // pred_check
          %p199 = pneg %p44
        $region34: #{tpu_custom_call.1} parent=31 // pred_check_branch
          %201 = sbr.rel (%p199) target = $region36
        $region35: #{tpu_custom_call.1} parent=31 // pred_region
          %203 = dma.done %s195, 256
        $region36: #{tpu_custom_call.1} parent=31 // pred_fallthru
          _
        %s204 = sand.u32 %s23, 1
        %s205 = scalar_lea.sflag [#allocation6], %s204
        %s206 = sand.u32 %s57, 1
        %s207 = smul.addr %s206, 2
        %s208 = scalar_lea.vmem [#allocation5], %s207
        // Predicated region
        $region37: #{tpu_custom_call.1} parent=31 // pred_check
          %p209 = pneg %p70
        $region38: #{tpu_custom_call.1} parent=31 // pred_check_branch
          %211 = sbr.rel (%p209) target = $region40
        $region39: #{tpu_custom_call.1} parent=31 // pred_region
          %213 = dma.done %s205, 32
        $region40: #{tpu_custom_call.1} parent=31 // pred_fallthru
          _
        // Predicated region
        $region41: #{tpu_custom_call.1} parent=31 // pred_check
          %p214 = pneg %p91
        $region42: #{tpu_custom_call.1} parent=31 // pred_check_branch
          %216 = sbr.rel (%p214) target = $region44
        $region43: #{tpu_custom_call.1} parent=31 // pred_region
          %218 = dma.done [#allocation6], 128
        $region44: #{tpu_custom_call.1} parent=31 // pred_fallthru
          _
        %s219 = sand.u32 %s31, 1
        %s220 = scalar_lea.sflag [#allocation3], %s219
        %s221 = sand.u32 %s31, 1
        %s222 = smul.addr %s221, 16
        %s223 = scalar_lea.vmem [#allocation2], %s222
        %p224 = pneg %p44
        %p225 = pneg %p41
        %s226 = sand.u32 %s23, 1
        %s227 = scalar_lea.sflag [#allocation6], %s226
        %s228 = sand.u32 %s57, 1
        %s229 = smul.addr %s228, 2
        %s230 = scalar_lea.vmem [#allocation5], %s229
        %p231 = pneg %p70
        %p232 = pneg %p67
        %p233 = pneg %p91
        %p234 = pneg %p88
        %p235 = pneg %p117
        %p236 = pneg %p114
        %s237 = sand.u32 %s104, 1
        %s238 = scalar_lea.sflag [#allocation4], %s237
        %s239 = sand.u32 %s104, 1
        %s240 = smul.addr %s239, 16
        %s241 = scalar_lea.vmem [#allocation8], %s240
        %s242 = smul.u32 2, %s23
        %s243 = smul.u32 2, %s23
        %s244 = smul.u32 2, %s23
        %v245 = vlaneseq
        %v246 = vshrl.u32 %v245, 7
        %v247 = vadd.s32 %v246, 8
        %v248 = vadd.s32 %v246, 16
        %v249 = vadd.s32 %v246, 24
        %v250 = vadd.s32 %v246, 32
        %v251 = vadd.s32 %v246, 40
        %v252 = vadd.s32 %v246, 48
        %v253 = vadd.s32 %v246, 56
        %v254 = vadd.s32 %v246, 64
        %v255 = vadd.s32 %v246, 72
        %v256 = vadd.s32 %v246, 80
        %v257 = vadd.s32 %v246, 88
        %v258 = vadd.s32 %v246, 96
        %v259 = vadd.s32 %v246, 104
        %v260 = vadd.s32 %v246, 112
        %v261 = vld [vmem:[%s208] sm:$0x3]
        %v262 = vperm.slane %v261, 0
        %v263 = vperm.slane %v261, 1
        %vm264 = vcmp.eq.s32.totalorder %v246, %v262
        %vm265 = vcmp.eq.s32.totalorder %v246, %v263
        %vm266 = vcmp.eq.s32.totalorder %v247, %v262
        %vm267 = vcmp.eq.s32.totalorder %v247, %v263
        %vm268 = vcmp.eq.s32.totalorder %v248, %v262
        %vm269 = vcmp.eq.s32.totalorder %v248, %v263
        %vm270 = vcmp.eq.s32.totalorder %v249, %v262
        %vm271 = vcmp.eq.s32.totalorder %v249, %v263
        %vm272 = vcmp.eq.s32.totalorder %v250, %v262
        %vm273 = vcmp.eq.s32.totalorder %v250, %v263
        %vm274 = vcmp.eq.s32.totalorder %v251, %v262
        %vm275 = vcmp.eq.s32.totalorder %v251, %v263
        %vm276 = vcmp.eq.s32.totalorder %v252, %v262
        %vm277 = vcmp.eq.s32.totalorder %v252, %v263
        %vm278 = vcmp.eq.s32.totalorder %v253, %v262
        %vm279 = vcmp.eq.s32.totalorder %v253, %v263
        %vm280 = vcmp.eq.s32.totalorder %v254, %v262
        %vm281 = vcmp.eq.s32.totalorder %v254, %v263
        %vm282 = vcmp.eq.s32.totalorder %v255, %v262
        %vm283 = vcmp.eq.s32.totalorder %v255, %v263
        %vm284 = vcmp.eq.s32.totalorder %v256, %v262
        %vm285 = vcmp.eq.s32.totalorder %v256, %v263
        %vm286 = vcmp.eq.s32.totalorder %v257, %v262
        %vm287 = vcmp.eq.s32.totalorder %v257, %v263
        %vm288 = vcmp.eq.s32.totalorder %v258, %v262
        %vm289 = vcmp.eq.s32.totalorder %v258, %v263
        %vm290 = vcmp.eq.s32.totalorder %v259, %v262
        %vm291 = vcmp.eq.s32.totalorder %v259, %v263
        %vm292 = vcmp.eq.s32.totalorder %v260, %v262
        %vm293 = vcmp.eq.s32.totalorder %v260, %v263
        %v294 = vsel %vm264, 1, 0
        %v295 = vsel %vm265, 1, 0
        %v296 = vsel %vm266, 1, 0
        %v297 = vsel %vm267, 1, 0
        %v298 = vsel %vm268, 1, 0
        %v299 = vsel %vm269, 1, 0
        %v300 = vsel %vm270, 1, 0
        %v301 = vsel %vm271, 1, 0
        %v302 = vsel %vm272, 1, 0
        %v303 = vsel %vm273, 1, 0
        %v304 = vsel %vm274, 1, 0
        %v305 = vsel %vm275, 1, 0
        %v306 = vsel %vm276, 1, 0
        %v307 = vsel %vm277, 1, 0
        %v308 = vsel %vm278, 1, 0
        %v309 = vsel %vm279, 1, 0
        %v310 = vsel %vm280, 1, 0
        %v311 = vsel %vm281, 1, 0
        %v312 = vsel %vm282, 1, 0
        %v313 = vsel %vm283, 1, 0
        %v314 = vsel %vm284, 1, 0
        %v315 = vsel %vm285, 1, 0
        %v316 = vsel %vm286, 1, 0
        %v317 = vsel %vm287, 1, 0
        %v318 = vsel %vm288, 1, 0
        %v319 = vsel %vm289, 1, 0
        %v320 = vsel %vm290, 1, 0
        %v321 = vsel %vm291, 1, 0
        %v322 = vsel %vm292, 1, 0
        %v323 = vsel %vm293, 1, 0
        %v324 = vcvt.s32.f32 %v294
        %v325 = vcvt.s32.f32 %v295
        %v326 = vcvt.s32.f32 %v296
        %v327 = vcvt.s32.f32 %v297
        %v328 = vcvt.s32.f32 %v298
        %v329 = vcvt.s32.f32 %v299
        %v330 = vcvt.s32.f32 %v300
        %v331 = vcvt.s32.f32 %v301
        %v332 = vcvt.s32.f32 %v302
        %v333 = vcvt.s32.f32 %v303
        %v334 = vcvt.s32.f32 %v304
        %v335 = vcvt.s32.f32 %v305
        %v336 = vcvt.s32.f32 %v306
        %v337 = vcvt.s32.f32 %v307
        %v338 = vcvt.s32.f32 %v308
        %v339 = vcvt.s32.f32 %v309
        %v340 = vcvt.s32.f32 %v310
        %v341 = vcvt.s32.f32 %v311
        %v342 = vcvt.s32.f32 %v312
        %v343 = vcvt.s32.f32 %v313
        %v344 = vcvt.s32.f32 %v314
        %v345 = vcvt.s32.f32 %v315
        %v346 = vcvt.s32.f32 %v316
        %v347 = vcvt.s32.f32 %v317
        %v348 = vcvt.s32.f32 %v318
        %v349 = vcvt.s32.f32 %v319
        %v350 = vcvt.s32.f32 %v320
        %v351 = vcvt.s32.f32 %v321
        %v352 = vcvt.s32.f32 %v322
        %v353 = vcvt.s32.f32 %v323
        %v354 = vld [vmem:[%s198] sm:$0xff]
        %v355 = vld [vmem:[%s198 + $0x8] sm:$0xff]
        %v356 = vld [vmem:[#allocation7] sm:$0xff]
        %357 = vmatpush.msra.mxu0 %v352
        %358 = vmatpush.msra.mxu0 %v350
        %359 = vmatpush.msra.mxu0 %v348
        %360 = vmatpush.msra.mxu0 %v346
        %361 = vmatpush.msra.mxu0 %v344
        %362 = vmatpush.msra.mxu0 %v342
        %363 = vmatpush.msra.mxu0 %v340
        %364 = vmatpush.msra.mxu0 %v338
        %365 = vmatpush.msra.mxu0 %v336
        %366 = vmatpush.msra.mxu0 %v334
        %367 = vmatpush.msra.mxu0 %v332
        %368 = vmatpush.msra.mxu0 %v330
        %369 = vmatpush.msra.mxu0 %v328
        %370 = vmatpush.msra.mxu0 %v326
        %371 = vmatpush.msra.mxu0 %v324
        %372 = vmatpush.msra.mxu0 %v354
        %373 = vmatmul.f32.gmra.mxu0 %v356
        %v374 = vpop.f32.mrf.mxu0
        %v375 = vadd.f32 0.0, %v374
        %376 = vdwg.mxu0
        %377 = vmatpush.msra.mxu0 %v353
        %378 = vmatpush.msra.mxu0 %v351
        %379 = vmatpush.msra.mxu0 %v349
        %380 = vmatpush.msra.mxu0 %v347
        %381 = vmatpush.msra.mxu0 %v345
        %382 = vmatpush.msra.mxu0 %v343
        %383 = vmatpush.msra.mxu0 %v341
        %384 = vmatpush.msra.mxu0 %v339
        %385 = vmatpush.msra.mxu0 %v337
        %386 = vmatpush.msra.mxu0 %v335
        %387 = vmatpush.msra.mxu0 %v333
        %388 = vmatpush.msra.mxu0 %v331
        %389 = vmatpush.msra.mxu0 %v329
        %390 = vmatpush.msra.mxu0 %v327
        %391 = vmatpush.msra.mxu0 %v325
        %392 = vmatpush.msra.mxu0 %v355
        %393 = vmatmul.f32.gmra.mxu0 %v356
        %v394 = vpop.f32.mrf.mxu0
        %v395 = vadd.f32 0.0, %v394
        %396 = vdwg.mxu0
        %397 = vst [vmem:[%s241] sm:$0xff] %v375
        %398 = vst [vmem:[%s241 + $0x8] sm:$0xff] %v395
        %s399 = sand.u32 %s104, 1
        %s400 = scalar_lea.sflag [#allocation4], %s399
        %s401 = sand.u32 %s104, 1
        %s402 = smul.addr %s401, 16
        %s403 = scalar_lea.vmem [#allocation8], %s402
        // Predicated region
        $region45: #{tpu_custom_call.1} parent=31 // pred_check
          %p404 = pneg %p114
        $region46: #{tpu_custom_call.1} parent=31 // pred_check_branch
          %406 = sbr.rel (%p404) target = $region48
        $region47: #{tpu_custom_call.1} parent=31 // pred_region
          %s407 = smul.u32 2, %s23
          %409 = vsyncadd %s400, 0
          %s410 = smul.addr %s407, 8
          %s411 = scalar_lea.hbm %s3, %s410
          %s413 = sshll.u32 %s403, 4
          %s414 = int_to_ptr.vmem [resolvable:$true] %s413
          %s415 = sshll.u32 %s411, 4
          %s416 = int_to_ptr.hbm [resolvable:$true] %s415
          %418 = dma.vmem_to_hbm [thread:$0]  %s414, 256, %s416, %s400
        $region48: #{tpu_custom_call.1} parent=31 // pred_fallthru
          _
      $region32: #{tpu_custom_call.1} parent=5 // pred_fallthru
        _
      %p419 = scmp.le.s32.totalorder 2, %s18
      // Predicated region
      $region49: #{tpu_custom_call.1} parent=5 // pred_check
        %p420 = pneg %p419
      $region50: #{tpu_custom_call.1} parent=5 // pred_check_branch
        %422 = sbr.rel (%p420) target = $region52
      $region51: #{tpu_custom_call.1} parent=5 // pred_region
        %s423 = ssub.s32 %s18, 2
        // Predicated region
        $region53: #{tpu_custom_call.1} parent=51 // pred_check
          %p424 = pneg %p120
        $region54: #{tpu_custom_call.1} parent=51 // pred_check_branch
          %426 = sbr.rel (%p424) target = $region56
        $region55: #{tpu_custom_call.1} parent=51 // pred_region
          %s427 = sand.u32 %s105, 1
          %s428 = scalar_lea.sflag [#allocation4], %s427
          %s429 = sand.u32 %s105, 1
          %s430 = smul.addr %s429, 16
          %s431 = scalar_lea.vmem [#allocation8], %s430
          %433 = dma.done %s428, 256
        $region56: #{tpu_custom_call.1} parent=51 // pred_fallthru
          _
      $region52: #{tpu_custom_call.1} parent=5 // pred_fallthru
        _
    $region6: #{tpu_custom_call.1} parent=1 // loop_footer
      %s22 = sadd.s32 1, %s18
    $region7: #{tpu_custom_call.1} parent=1 // loop_footer_branch
      %17 = sbr.rel target = $region3
    $region8: #{tpu_custom_call.1} parent=1 // loop_exit
      _
    %434 = vsyncpa [#allocation3], 1
    %s435 = scalar_lea.sflag [#allocation3], 1
    %436 = vsyncpa %s435, 1
    %437 = vsyncpa [#allocation6], 1
    %s438 = scalar_lea.sflag [#allocation6], 1
    %439 = vsyncpa %s438, 1
    %440 = vsyncpa [#allocation4], 1
    %s441 = scalar_lea.sflag [#allocation4], 1
    %442 = vsyncpa %s441, 1

</llo_original>
